<compile_context>
chip_gen: v6e
topology: v6e:2x2x1
jax: 0.10.0
libtpu: 0.0.40
codegen_flags: <defaults>
</compile_context>

<pallas_src>
import functools

import jax
import jax.numpy as jnp
from jax.experimental import pallas as pl
from jax.experimental.pallas import tpu as pltpu

_TARGET_BLOCK_BYTES = 3 << 20   # ~3 MiB payload per (tr, D) block (2-4 MiB sweet spot)
_VMEM_LIMIT_BYTES = 32 << 20    # safe scoped limit on v5e/v6e (128 MiB) and v7x (64 MiB)


def _round_up(v, m):
    return ((v + m - 1) // m) * m


def _vmem_budget_bytes():
    """Per-step working-set budget, derived from the chip's physical VMEM."""
    try:
        cap = pltpu.get_tpu_info().vmem_capacity_bytes
    except Exception:  # interpret mode / older runtimes
        cap = 64 << 20  # assume the smallest (v7x) if we cannot query
    # Stay within the scoped limit we request and leave headroom for Mosaic scratch.
    return min(24 << 20, (3 * cap) // 8)


def _pick_row_tile(n_rows, d, itemsize, vmem_budget_bytes):
    """Byte-budget-based row tile (multiple of 8) for a (n_rows, d) LayerNorm."""
    if n_rows <= 8:
        return n_rows  # block == full array dim is always legal

    row_bytes = d * itemsize
    # ~2-4 MiB of payload per block amortizes the ~0.35us per-grid-step overhead.
    tr = max(8, _TARGET_BLOCK_BYTES // row_bytes)

    # VMEM working set per step: 2x double-buffered input + 2x output blocks
    # (in x.dtype) plus ~3 block-sized f32 temporaries (x_f32, xc, y) in-kernel.
    per_row_ws = 4 * row_bytes + 3 * d * 4
    tr = min(tr, max(8, vmem_budget_bytes // per_row_ws))

    # Keep >= 2 grid steps once there is enough work to split: enables software
    # pipelining (prefetch i+1 while computing i) and lets v7x use both TCs.
    if n_rows >= 64:
        tr = min(tr, _round_up(pl.cdiv(n_rows, 2), 8))

    tr = min(tr, _round_up(n_rows, 8))
    tr = max(8, (tr // 8) * 8)

    # Best effort: even number of grid steps so a 2-TensorCore chip (v7x)
    # load-balances the "parallel" axis; no-op on v5e/v6e.
    steps = pl.cdiv(n_rows, tr)
    if steps > 1 and steps % 2 == 1:
        tr_even = max(8, _round_up(pl.cdiv(n_rows, steps + 1), 8))
        if pl.cdiv(n_rows, tr_even) % 2 == 0:
            tr = tr_even
    return tr


def _layer_norm_kernel(x_ref, ab_ref, o_ref, *, eps, d_model):
    """LayerNorm over the last dim of a (TR, D) block.

    x_ref : (TR, D) tile of the flattened (B*S, D) input
    ab_ref: (2, D)  packed f32 params: row 0 = a_2 (scale), row 1 = b_2 (bias)
    o_ref : (TR, D) output tile
    """
    x = x_ref[...].astype(jnp.float32)                                    # (TR, D)
    mean = jnp.sum(x, axis=-1, keepdims=True) * jnp.float32(1.0 / d_model)
    xc = x - mean
    # torch.Tensor.std is unbiased (ddof=1) by default.
    var = jnp.sum(xc * xc, axis=-1, keepdims=True) * jnp.float32(
        1.0 / max(d_model - 1, 1))
    # approx=False keeps exact numerics (1e-5 vs torch); approx=True would use
    # the otherwise-idle EUP slot at slightly looser precision.
    inv = pl.reciprocal(jnp.sqrt(var) + jnp.float32(eps), approx=False)   # (TR, 1)
    ab = ab_ref[...]                                                      # (2, D) f32
    a = ab[0:1, :]
    b = ab[1:2, :]
    o_ref[...] = ((xc * inv) * a + b).astype(o_ref.dtype)


def layer_norm_forward(x, a_2, b_2, *, eps=1e-6, row_tile=None, donate_x=False):
    """Pallas LayerNorm matching `LayerNorm.forward` of the PyTorch spec.

    x: (..., D)   a_2, b_2: (D,)
    row_tile: optional explicit row-tile override (testing); None => auto sizing.
    donate_x: alias the output onto x's HBM buffer (only if x is dead afterwards).
    """
    orig_shape = x.shape
    D = orig_shape[-1]
    x2 = x.reshape(-1, D)
    N = x2.shape[0]
    itemsize = jnp.dtype(x.dtype).itemsize

    if row_tile is None:
        tr = _pick_row_tile(N, D, itemsize, _vmem_budget_bytes())
    else:
        tr = min(int(row_tile), N)
        if N > 8:
            tr = max(8, (tr // 8) * 8)

    steps = pl.cdiv(N, tr)

    # Pack scale/bias into one constant-index (2, D) f32 input: single param DMA,
    # no per-step casts.
    ab = jnp.stack([a_2.reshape(D), b_2.reshape(D)]).astype(jnp.float32)

    kernel = functools.partial(_layer_norm_kernel, eps=float(eps), d_model=D)

    out = pl.pallas_call(
        kernel,
        out_shape=jax.ShapeDtypeStruct((N, D), x.dtype),
        grid_spec=pltpu.PrefetchScalarGridSpec(
            num_scalar_prefetch=0,
            grid=(steps,),
            in_specs=[
                pl.BlockSpec((tr, D), lambda i: (i, 0)),
                # constant block index -> params fetched once, not per step
                pl.BlockSpec((2, D), lambda i: (0, 0)),
            ],
            out_specs=pl.BlockSpec((tr, D), lambda i: (i, 0)),
        ),
        compiler_params=pltpu.CompilerParams(
            dimension_semantics=("parallel",),
            vmem_limit_bytes=_VMEM_LIMIT_BYTES,
        ),
        input_output_aliases=({0: 0} if donate_x else {}),
    )(x2, ab)
    return out.reshape(orig_shape)


def encoder_forward(x, mask, layers, norm_a, norm_b, *, eps=1e-6):
    """Encoder.forward: run the layer stack, then the final Pallas LayerNorm.

    `layers` is an iterable of JAX callables (x, mask) -> x.
    """
    # TODO(synk): the per-layer EncoderLayer (self-attention + feed-forward) is an
    # undefined constructor argument in the spec, so layers are plain callables here.
    n_layers = 0
    for layer in layers:
        x = layer(x, mask)
        n_layers += 1
    # After the layer stack, x is an intermediate we own -> safe to alias the
    # LayerNorm output onto its buffer (saves an extra N*D HBM allocation).
    return layer_norm_forward(x, norm_a, norm_b, eps=eps, donate_x=n_layers > 0)


if __name__ == "__main__":
    eps = 1e-6
    key = jax.random.PRNGKey(0)
    kx, ka, kb, kx2 = jax.random.split(key, 4)

    def ref_ln(x, a, b):
        mean = x.mean(-1, keepdims=True)
        std = jnp.std(x, axis=-1, ddof=1, keepdims=True)
        return a * (x - mean) / (std + eps) + b

    # --- small shapes consistent with the module: (batch, seq, d_model) ---
    B, S, D = 2, 8, 32
    x = jax.random.normal(kx, (B, S, D), dtype=jnp.float32)
    mask = jnp.ones((B, 1, S), dtype=jnp.float32)
    a_2 = 1.0 + 0.1 * jax.random.normal(ka, (D,), dtype=jnp.float32)
    b_2 = 0.1 * jax.random.normal(kb, (D,), dtype=jnp.float32)

    # Encoder with an empty (identity) layer stack -> just the final LayerNorm.
    out = encoder_forward(x, mask, layers=(), norm_a=a_2, norm_b=b_2, eps=eps)
    out = jax.block_until_ready(out)
    assert out.shape == (B, S, D)
    assert jnp.allclose(out, ref_ln(x, a_2, b_2), atol=1e-5, rtol=1e-5), \
        "LayerNorm mismatch"

    # Forced multi-tile path (grid=2) at the tiny shape.
    out_tiled = layer_norm_forward(x, a_2, b_2, eps=eps, row_tile=8)
    out_tiled = jax.block_until_ready(out_tiled)
    assert jnp.allclose(out_tiled, ref_ln(x, a_2, b_2), atol=1e-5, rtol=1e-5), \
        "tiled LayerNorm mismatch"

    # Medium shape exercising the automatic byte-based tiling (>=2 even grid steps).
    B2, S2, D2 = 4, 128, 256
    x_big = jax.random.normal(kx2, (B2, S2, D2), dtype=jnp.float32)
    a_big = 1.0 + 0.05 * jnp.arange(D2, dtype=jnp.float32) / D2
    b_big = 0.05 * jnp.arange(D2, dtype=jnp.float32) / D2
    out_big = layer_norm_forward(x_big, a_big, b_big, eps=eps)
    out_big = jax.block_until_ready(out_big)
    assert jnp.allclose(out_big, ref_ln(x_big, a_big, b_big), atol=1e-5, rtol=1e-5), \
        "auto-tiled LayerNorm mismatch"

    # Donated-input path (input_output_aliases) under jit; the donated copy is
    # not used afterwards.
    x_don = x_big + 0.0
    donate_fn = jax.jit(
        lambda xx: layer_norm_forward(xx, a_big, b_big, eps=eps, donate_x=True))
    out_don = jax.block_until_ready(donate_fn(x_don))
    assert jnp.allclose(out_don, ref_ln(x_big, a_big, b_big), atol=1e-5, rtol=1e-5), \
        "donated LayerNorm mismatch"

    print("KERNEL_OK")
</pallas_src>

<mosaic_0001>
module attributes {stable_mosaic.version = 11 : i64} {
  func.func @_layer_norm_kernel(%arg0: i32, %arg1: memref<16x32xf32, #tpu.memory_space<vmem>>, %arg2: memref<2x32xf32, #tpu.memory_space<vmem>>, %arg3: memref<16x32xf32, #tpu.memory_space<vmem>>) attributes {dimension_semantics = [#tpu.dimension_semantics<parallel>], iteration_bounds = array<i64: 1>, scalar_prefetch = 0 : i64, scratch_operands = 0 : i64, tpu.core_type = #tpu.core_type<tc>, window_params = [{transform_indices = @transform_0, window_bounds = array<i64: 16, 32>}, {pipeline_mode = #tpu.pipeline_mode<synchronous>, transform_indices = @transform_1, window_bounds = array<i64: 2, 32>}, {transform_indices = @transform_2, window_bounds = array<i64: 16, 32>}]} {
    %c0 = arith.constant 0 : index
    %c0_0 = arith.constant 0 : index
    %0 = vector.load %arg1[%c0, %c0_0] : memref<16x32xf32, #tpu.memory_space<vmem>>, vector<16x32xf32>
    %cst = arith.constant dense<0.000000e+00> : vector<16xf32>
    %1 = vector.multi_reduction <add>, %0, %cst [1] : vector<16x32xf32> to vector<16xf32>
    %2 = vector.shape_cast %1 : vector<16xf32> to vector<16x1xf32>
    %cst_1 = arith.constant 3.125000e-02 : f32
    %3 = vector.broadcast %cst_1 : f32 to vector<16x1xf32>
    %4 = arith.mulf %2, %3 : vector<16x1xf32>
    %5 = vector.broadcast %4 : vector<16x1xf32> to vector<16x32xf32>
    %6 = arith.subf %0, %5 : vector<16x32xf32>
    %7 = arith.mulf %6, %6 : vector<16x32xf32>
    %cst_2 = arith.constant dense<0.000000e+00> : vector<16xf32>
    %8 = vector.multi_reduction <add>, %7, %cst_2 [1] : vector<16x32xf32> to vector<16xf32>
    %9 = vector.shape_cast %8 : vector<16xf32> to vector<16x1xf32>
    %cst_3 = arith.constant 0.0322580636 : f32
    %10 = vector.broadcast %cst_3 : f32 to vector<16x1xf32>
    %11 = arith.mulf %9, %10 : vector<16x1xf32>
    %12 = math.sqrt %11 : vector<16x1xf32>
    %cst_4 = arith.constant 9.99999997E-7 : f32
    %13 = vector.broadcast %cst_4 : f32 to vector<16x1xf32>
    %14 = arith.addf %12, %13 : vector<16x1xf32>
    %15 = tpu.reciprocal %14 : vector<16x1xf32> -> vector<16x1xf32>
    %c0_5 = arith.constant 0 : index
    %c0_6 = arith.constant 0 : index
    %16 = vector.load %arg2[%c0_5, %c0_6] : memref<2x32xf32, #tpu.memory_space<vmem>>, vector<2x32xf32>
    %17 = vector.extract_strided_slice %16 {offsets = [0, 0], sizes = [1, 32], strides = [1, 1]} : vector<2x32xf32> to vector<1x32xf32>
    %18 = vector.extract_strided_slice %16 {offsets = [1, 0], sizes = [1, 32], strides = [1, 1]} : vector<2x32xf32> to vector<1x32xf32>
    %19 = vector.broadcast %15 : vector<16x1xf32> to vector<16x32xf32>
    %20 = arith.mulf %6, %19 : vector<16x32xf32>
    %21 = vector.broadcast %17 : vector<1x32xf32> to vector<16x32xf32>
    %22 = arith.mulf %20, %21 : vector<16x32xf32>
    %23 = vector.broadcast %18 : vector<1x32xf32> to vector<16x32xf32>
    %24 = arith.addf %22, %23 : vector<16x32xf32>
    %c0_7 = arith.constant 0 : index
    %c0_8 = arith.constant 0 : index
    %25 = vector.load %arg3[%c0_7, %c0_8] : memref<16x32xf32, #tpu.memory_space<vmem>>, vector<16x32xf32>
    tpu.vector_store %arg3[%c0_7, %c0_8], %24 {strides = array<i32>} : memref<16x32xf32, #tpu.memory_space<vmem>>, vector<16x32xf32>,
    return
  }
  func.func @transform_0(%arg0: i32) -> (i32, i32) {
    %c0_i32 = arith.constant 0 : i32
    %c0_i32_0 = arith.constant 0 : i32
    return %arg0, %c0_i32 : i32, i32
  }
  func.func @transform_1(%arg0: i32) -> (i32, i32) {
    %c0_i32 = arith.constant 0 : i32
    %c0_i32_0 = arith.constant 0 : i32
    %c0_i32_1 = arith.constant 0 : i32
    return %c0_i32, %c0_i32_0 : i32, i32
  }
  func.func @transform_2(%arg0: i32) -> (i32, i32) {
    %c0_i32 = arith.constant 0 : i32
    %c0_i32_0 = arith.constant 0 : i32
    return %arg0, %c0_i32 : i32, i32
  }
}

</mosaic_0001>

<llo_original>
// kernel: tpu_custom_call.1
$region0: #{tpu_custom_call.1}
  #allocation0 [shape = 'u32[]', space=smem, size = 0x4, offset = 0x4, fixed_abs, tag = 'smem constant byte address 0x4 - core index']
  #allocation1 [shape = 'u32[144,128]{1,0:T(1,128)}', space=vmem, size = 0x12000, scoped, tag = 'internal scratch']
  %s0 = inlined_call_operand.hbm [shape: f32[16,32], index: 0, kind: input, shape index: {}]
  %s1 = inlined_call_operand.hbm [shape: f32[2,32], index: 1, kind: input, shape index: {}]
  %s2 = inlined_call_operand.hbm [shape: f32[16,32], index: 2, kind: output, shape index: {}]
  %s3 = sld [smem:[#allocation0]]
  $region26: #{tpu_custom_call.1} parent=0
    _
  %s5 = ssub.s32 1, %s3
  %s6 = scalar_select 0, %s5, %s3
  $region1: #{tpu_custom_call.1} parent=0
    #allocation2 [shape = 'u8[8192]{0}', space=vmem, size = 0x2000, scoped, tag = 'input window, operand 0, single buffered']
    #allocation3 [shape = 's32[1]{0}', space=sflag, size = 0x4, scoped, tag = 'scoped memory for tpu_custom_call.1']
    #allocation4 [shape = 's32[1]{0}', space=sflag, size = 0x4, scoped, tag = 'scoped memory for tpu_custom_call.1']
    #allocation5 [shape = 'u8[1024]{0}', space=vmem, size = 0x400, scoped, tag = 'input window, operand 1, single buffered']
    #allocation6 [shape = 's32[1]{0}', space=sflag, size = 0x4, scoped, tag = 'scoped memory for tpu_custom_call.1']
    #allocation7 [shape = 'u8[8192]{0}', space=vmem, size = 0x2000, scoped, tag = 'output window, operand 0, single buffered']
    %7 = vsyncpa [#allocation3], 0
    %8 = vsyncpa [#allocation6], 0
    %9 = vsyncpa [#allocation4], 0
    // Predicated region
    $region2: #{tpu_custom_call.1} parent=1 // pred_check
      _
    $region3: #{tpu_custom_call.1} parent=1 // pred_check_branch
      %11 = sbr.rel (0) target = $region5
    $region4: #{tpu_custom_call.1} parent=1 // pred_region
      %s13 = ssub.s32 256, 256
      %14 = vsyncadd [#allocation3], %s13
      %s15 = sshll.u32 [#allocation2], 4
      %s16 = int_to_ptr.vmem [resolvable:$true] %s15
      %21 = dma.hbm_to_vmem [thread:$0]  %s0, 256, %s16, [#allocation3], 128, 128, 8
    $region5: #{tpu_custom_call.1} parent=1 // pred_fallthru
      _
    // Predicated region
    $region6: #{tpu_custom_call.1} parent=1 // pred_check
      _
    $region7: #{tpu_custom_call.1} parent=1 // pred_check_branch
      %23 = sbr.rel (0) target = $region9
    $region8: #{tpu_custom_call.1} parent=1 // pred_region
      %s25 = ssub.s32 32, 32
      %26 = vsyncadd [#allocation6], %s25
      %s28 = sshll.u32 [#allocation5], 4
      %s29 = int_to_ptr.vmem [resolvable:$true] %s28
      %31 = dma.hbm_to_vmem [thread:$0]  %s1, 32, %s29, [#allocation6]
    $region9: #{tpu_custom_call.1} parent=1 // pred_fallthru
      _
    // Predicated region
    $region10: #{tpu_custom_call.1} parent=1 // pred_check
      _
    $region11: #{tpu_custom_call.1} parent=1 // pred_check_branch
      %33 = sbr.rel (0) target = $region13
    $region12: #{tpu_custom_call.1} parent=1 // pred_region
      %34 = dma.done [#allocation3], 256
    $region13: #{tpu_custom_call.1} parent=1 // pred_fallthru
      _
    // Predicated region
    $region14: #{tpu_custom_call.1} parent=1 // pred_check
      _
    $region15: #{tpu_custom_call.1} parent=1 // pred_check_branch
      %36 = sbr.rel (0) target = $region17
    $region16: #{tpu_custom_call.1} parent=1 // pred_region
      %37 = dma.done [#allocation6], 32
    $region17: #{tpu_custom_call.1} parent=1 // pred_fallthru
      _
    %v38 = vld [vmem:[#allocation2] sm:$0xff]
    %v39 = vld [vmem:[#allocation2 + $0x8] sm:$0xff]
    %vm40 = vcmask 261120
    %v41 = vsel %vm40, %v38, 0.0
    %42 = vadd.xlane.f32.xlu0 %v41
    %v43 = vpop.xlane.xlu0 %42
    %v44 = vsel %vm40, %v39, 0.0
    %45 = vadd.xlane.f32.xlu0 %v44
    %v46 = vpop.xlane.xlu0 %45
    %v47 = vmul.f32 %v43, 0.03125
    %v48 = vmul.f32 %v46, 0.03125
    %v49 = vsub.f32 %v38, %v47
    %v50 = vsub.f32 %v39, %v48
    %v51 = vmul.f32 %v49, %v49
    %v52 = vmul.f32 %v50, %v50
    %v53 = vsel %vm40, %v51, 0.0
    %54 = vadd.xlane.f32.xlu0 %v53
    %v55 = vpop.xlane.xlu0 %54
    %v56 = vsel %vm40, %v52, 0.0
    %57 = vadd.xlane.f32.xlu0 %v56
    %v58 = vpop.xlane.xlu0 %57
    %v59 = vmul.f32 %v55, 0.032258064
    %v60 = vmul.f32 %v58, 0.032258064
    %v61 = vrsqrt.pop %v59
    %v62 = vmul.f32 %v59, %v61
    %vm63 = vcmp.eq.f32.partialorder %v59, inf
    %v64 = vsel %vm63, %v59, %v62
    %vm65 = vcmp.eq.f32.partialorder %v59, 0.0
    %v66 = vand.u32 %v59, 2147483648
    %v67 = vsel %vm65, %v66, %v64
    %v68 = vrsqrt.pop %v60
    %v69 = vmul.f32 %v60, %v68
    %vm70 = vcmp.eq.f32.partialorder %v60, inf
    %v71 = vsel %vm70, %v60, %v69
    %vm72 = vcmp.eq.f32.partialorder %v60, 0.0
    %v73 = vand.u32 %v60, 2147483648
    %v74 = vsel %vm72, %v73, %v71
    %v75 = vadd.f32 %v67, 1e-06
    %v76 = vadd.f32 %v74, 1e-06
    %v77 = vrcp.pop %v75
    %v78 = vrcp.pop %v76
    %v79 = vld [vmem:[#allocation5] sm:$0x3]
    %v80 = vmul.f32 %v49, %v77
    %v81 = vmul.f32 %v50, %v78
    %v82 = vlaneseq
    %v83 = vshrl.u32 %v82, 7
    %v84 = vsub.s32 0, %v83
    %v85 = vrot.slane %v79, %v84
    %v86 = vmul.f32 %v80, %v85
    %v87 = vmul.f32 %v81, %v85
    %v88 = vlaneseq
    %v89 = vshrl.u32 %v88, 7
    %v90 = vsub.s32 1, %v89
    %v91 = vrot.slane %v79, %v90
    %v92 = vadd.f32 %v86, %v91
    %v93 = vadd.f32 %v87, %v91
    %94 = vst.msk [vmem:[#allocation7] sm:$0xff] %vm40, %v92
    %95 = vst.msk [vmem:[#allocation7 + $0x8] sm:$0xff] %vm40, %v93
    // Predicated region
    $region18: #{tpu_custom_call.1} parent=1 // pred_check
      _
    $region19: #{tpu_custom_call.1} parent=1 // pred_check_branch
      %97 = sbr.rel (0) target = $region21
    $region20: #{tpu_custom_call.1} parent=1 // pred_region
      %s99 = ssub.s32 256, 256
      %100 = vsyncadd [#allocation4], %s99
      %s101 = sshll.u32 [#allocation7], 4
      %s102 = int_to_ptr.vmem [resolvable:$true] %s101
      %107 = dma.vmem_to_hbm [thread:$0]  %s102, 256, %s2, [#allocation4], 128, 128, 8
    $region21: #{tpu_custom_call.1} parent=1 // pred_fallthru
      _
    // Predicated region
    $region22: #{tpu_custom_call.1} parent=1 // pred_check
      _
    $region23: #{tpu_custom_call.1} parent=1 // pred_check_branch
      %109 = sbr.rel (0) target = $region25
    $region24: #{tpu_custom_call.1} parent=1 // pred_region
      %110 = dma.done [#allocation4], 256
    $region25: #{tpu_custom_call.1} parent=1 // pred_fallthru
      _
    %111 = vsyncpa [#allocation3], 1
    %112 = vsyncpa [#allocation6], 1
    %113 = vsyncpa [#allocation4], 1

</llo_original>
